<compile_context>
chip_gen: v7x
topology: tpu7x:2x2x1
jax: 0.10.0
libtpu: 0.0.40
codegen_flags: <defaults>
</compile_context>

<pallas_src>
import math
import numpy as np

import jax
import jax.numpy as jnp
from jax.experimental import pallas as pl
from jax.experimental.pallas import tpu as pltpu


def build_pe_table(d_model: int, max_len: int) -> jnp.ndarray:
    """Deterministic sin/cos positional-encoding buffer, identical to __init__."""
    position = np.arange(0, max_len, dtype=np.float32)[:, None]          # (max_len, 1)
    div_term = np.exp(
        np.arange(0, d_model, 2, dtype=np.float32) * -(math.log(10000.0) / d_model)
    )                                                                     # (d_model/2,)
    pe = np.zeros((max_len, d_model), dtype=np.float32)
    pe[:, 0::2] = np.sin(position * div_term)
    pe[:, 1::2] = np.cos(position * div_term)
    return jnp.asarray(pe)


def _add_kernel(x_ref, pe_ref, o_ref):
    # x_ref : (1, TN, LDp) lane-dense activation tile
    # pe_ref: (1, 1,  LDp) gathered pe slab for this batch (broadcast over TN)
    # Dropout == identity (eval mode).
    o_ref[...] = x_ref[...] + pe_ref[...]


def _vmem_capacity_bytes() -> int:
    """Physical VMEM per TensorCore; conservative v7x fallback if unqueryable."""
    try:
        return int(pltpu.get_tpu_info().vmem_capacity_bytes)
    except Exception:
        return 64 << 20


def _pick_tn(N: int, row_bytes: int, target_bytes: int) -> int:
    """N-tile size: full axis if it fits the target, else a multiple of 8.
    (Block dims must be a multiple of 8 on the sublane axis OR equal the full
    array dim; cdiv grid handles a ragged last block.)"""
    if N * row_bytes <= target_bytes:
        return N
    tn = max(8, (target_bytes // row_bytes) // 8 * 8)
    return int(min(tn, N))


def positional_encoding(x, idx_s, pe_table):
    """x: (B, N, L, D), idx_s: (B, L) int, pe_table: (max_len, D) f32."""
    B, N, L, D = x.shape
    LD = L * D
    itemsize = jnp.dtype(x.dtype).itemsize

    # --- Hoisted gather (plain XLA): (B, L, D) -> lane-dense (B, 1, L*D). ---
    # JAX advanced indexing clamps OOB indices (VMEM-safe, matches prior clamp).
    pe_g = pe_table[idx_s].astype(x.dtype).reshape(B, 1, LD)
    x2 = x.reshape(B, N, LD)                                  # free metadata reshape

    # --- Guarantee a 128-lane-aligned last dim (unmasked vst). ---
    pad = (-LD) % 128
    LDp = LD + pad
    if pad:
        x2 = jnp.pad(x2, ((0, 0), (0, 0), (0, pad)))
        pe_g = jnp.pad(pe_g, ((0, 0), (0, 0), (0, pad)))

    # --- Per-generation tile / VMEM sizing. ---
    vmem_cap = _vmem_capacity_bytes()
    if vmem_cap <= (64 << 20):                # v7x-class: leave headroom
        vmem_budget = 48 << 20
        target_tile = 6 << 20
    else:                                      # v5e / v6e: 128 MiB physical
        vmem_budget = 100 << 20
        target_tile = 8 << 20

    row_bytes = LDp * itemsize
    # Double-buffered in + out tiles = 4x tile must fit the budget (with headroom).
    target_tile = min(target_tile, max(row_bytes, (vmem_budget - (8 << 20)) // 4))
    TN = _pick_tn(N, row_bytes, target_tile)
    grid = (B, pl.cdiv(N, TN))

    tile_bytes = TN * row_bytes
    pe_block_bytes = 8 * LDp * itemsize        # (1,1,LDp) block, sublane-padded to 8
    vmem_limit = 4 * tile_bytes + 2 * pe_block_bytes + (4 << 20)
    vmem_limit = int(min(max(vmem_limit, 16 << 20), vmem_budget))

    out = pl.pallas_call(
        _add_kernel,
        out_shape=jax.ShapeDtypeStruct((B, N, LDp), x.dtype),
        grid_spec=pltpu.PrefetchScalarGridSpec(
            num_scalar_prefetch=0,
            grid=grid,
            in_specs=[
                pl.BlockSpec((1, TN, LDp), lambda b, n: (b, n, 0)),   # x tile
                pl.BlockSpec((1, 1, LDp), lambda b, n: (b, 0, 0)),    # gathered pe
            ],
            out_specs=pl.BlockSpec((1, TN, LDp), lambda b, n: (b, n, 0)),
        ),
        compiler_params=pltpu.CompilerParams(
            dimension_semantics=("parallel", "parallel"),   # no carried state
            vmem_limit_bytes=vmem_limit,
        ),
    )(x2, pe_g)

    if pad:
        out = out[..., :LD]
    return out.reshape(B, N, L, D)


if __name__ == "__main__":
    # Small shapes consistent with the module's forward:
    B, N, L, D = 2, 4, 8, 32          # batch, MSA depth, residues, d_model
    MAX_LEN = 64                      # max_len (5000 in the module; small demo)

    key = jax.random.PRNGKey(0)
    kx, ki = jax.random.split(key)
    x = jax.random.normal(kx, (B, N, L, D), dtype=jnp.float32)
    idx_s = jax.random.randint(ki, (B, L), 0, MAX_LEN, dtype=jnp.int32)

    pe_table = build_pe_table(D, MAX_LEN)

    out = positional_encoding(x, idx_s, pe_table)
    out = jax.block_until_ready(out)

    # Pure-JAX reference (eval-mode dropout == identity).
    ref = x + pe_table[idx_s][:, None, :, :]
    np.testing.assert_allclose(np.asarray(out), np.asarray(ref), rtol=1e-6, atol=1e-6)

    print("KERNEL_OK")
</pallas_src>

<mosaic_0001>
module attributes {stable_mosaic.version = 11 : i64} {
  func.func @_add_kernel(%arg0: i32, %arg1: i32, %arg2: memref<1x4x256xf32, #tpu.memory_space<vmem>>, %arg3: memref<1x1x256xf32, #tpu.memory_space<vmem>>, %arg4: memref<1x4x256xf32, #tpu.memory_space<vmem>>) attributes {dimension_semantics = [#tpu.dimension_semantics<parallel>, #tpu.dimension_semantics<parallel>], iteration_bounds = array<i64: 2, 1>, scalar_prefetch = 0 : i64, scratch_operands = 0 : i64, tpu.core_type = #tpu.core_type<tc>, window_params = [{transform_indices = @transform_0, window_bounds = array<i64: 1, 4, 256>}, {transform_indices = @transform_1, window_bounds = array<i64: 1, 1, 256>}, {transform_indices = @transform_2, window_bounds = array<i64: 1, 4, 256>}]} {
    %c0 = arith.constant 0 : index
    %c0_0 = arith.constant 0 : index
    %c0_1 = arith.constant 0 : index
    %0 = vector.load %arg2[%c0, %c0_0, %c0_1] : memref<1x4x256xf32, #tpu.memory_space<vmem>>, vector<1x4x256xf32>
    %c0_2 = arith.constant 0 : index
    %c0_3 = arith.constant 0 : index
    %c0_4 = arith.constant 0 : index
    %1 = vector.load %arg3[%c0_2, %c0_3, %c0_4] : memref<1x1x256xf32, #tpu.memory_space<vmem>>, vector<1x1x256xf32>
    %2 = vector.broadcast %1 : vector<1x1x256xf32> to vector<1x4x256xf32>
    %3 = arith.addf %0, %2 : vector<1x4x256xf32>
    %c0_5 = arith.constant 0 : index
    %c0_6 = arith.constant 0 : index
    %c0_7 = arith.constant 0 : index
    %4 = vector.load %arg4[%c0_5, %c0_6, %c0_7] : memref<1x4x256xf32, #tpu.memory_space<vmem>>, vector<1x4x256xf32>
    tpu.vector_store %arg4[%c0_5, %c0_6, %c0_7], %3 {strides = array<i32>} : memref<1x4x256xf32, #tpu.memory_space<vmem>>, vector<1x4x256xf32>,
    return
  }
  func.func @transform_0(%arg0: i32, %arg1: i32) -> (i32, i32, i32) {
    %c0_i32 = arith.constant 0 : i32
    %c0_i32_0 = arith.constant 0 : i32
    return %arg0, %arg1, %c0_i32 : i32, i32, i32
  }
  func.func @transform_1(%arg0: i32, %arg1: i32) -> (i32, i32, i32) {
    %c0_i32 = arith.constant 0 : i32
    %c0_i32_0 = arith.constant 0 : i32
    %c0_i32_1 = arith.constant 0 : i32
    return %arg0, %c0_i32, %c0_i32_0 : i32, i32, i32
  }
  func.func @transform_2(%arg0: i32, %arg1: i32) -> (i32, i32, i32) {
    %c0_i32 = arith.constant 0 : i32
    %c0_i32_0 = arith.constant 0 : i32
    return %arg0, %arg1, %c0_i32 : i32, i32, i32
  }
}

</mosaic_0001>

<llo_original>
// kernel: tpu_custom_call.1
$region0: #{tpu_custom_call.1}
  #allocation0 [shape = 'u32[]', space=smem, size = 0x4, offset = 0x4, fixed_abs, tag = 'smem constant byte address 0x4 - core index']
  #allocation1 [shape = 'u32[144,128]{1,0:T(1,128)}', space=vmem, size = 0x12000, scoped, tag = 'internal scratch']
  %s0 = inlined_call_operand.hbm [shape: f32[2,4,256], index: 0, kind: input, shape index: {}]
  %s1 = inlined_call_operand.hbm [shape: f32[2,1,256], index: 1, kind: input, shape index: {}]
  %s2 = inlined_call_operand.hbm [shape: f32[2,4,256], index: 2, kind: output, shape index: {}]
  %s3 = sld [smem:[#allocation0]]
  $region49: #{tpu_custom_call.1} parent=0
    _
  %s5 = ssub.s32 1, %s3
  %s6 = scalar_select 0, %s5, %s3
  $region1: #{tpu_custom_call.1} parent=0
    #allocation2 [shape = 'u8[8192]{0}', space=vmem, size = 0x2000, scoped, tag = 'input window, operand 0']
    #allocation3 [shape = 's32[2]{0}', space=sflag, size = 0x8, scoped, tag = 'scoped memory for tpu_custom_call.1']
    #allocation4 [shape = 's32[2]{0}', space=sflag, size = 0x8, scoped, tag = 'scoped memory for tpu_custom_call.1']
    #allocation5 [shape = 'u8[2048]{0}', space=vmem, size = 0x800, scoped, tag = 'input window, operand 1']
    #allocation6 [shape = 's32[2]{0}', space=sflag, size = 0x8, scoped, tag = 'scoped memory for tpu_custom_call.1']
    #allocation7 [shape = 'u8[8192]{0}', space=vmem, size = 0x2000, scoped, tag = 'output window, operand 0']
    %7 = vsyncpa [#allocation3], 0
    %s8 = scalar_lea.sflag [#allocation3], 1
    %9 = vsyncpa %s8, 0
    %10 = vsyncpa [#allocation6], 0
    %s11 = scalar_lea.sflag [#allocation6], 1
    %12 = vsyncpa %s11, 0
    %13 = vsyncpa [#allocation4], 0
    %s14 = scalar_lea.sflag [#allocation4], 1
    %15 = vsyncpa %s14, 0
    loop: start=0, step=1, limit=4
    $region2: #{tpu_custom_call.1} parent=1 // loop_pre_header
      _
    $region3: #{tpu_custom_call.1} parent=1 // loop_header
      %s17 = sphi 0, %s21
      %p18 = scmp.ge.s32.totalorder %s17, 4
      %s24 = sphi 0, %s36
      %s25 = sphi 0, %s32
      %s26 = sphi 0, %s24
      %s27 = sphi 0, %s25
      %s28 = sphi 0, %s26
      %s29 = sphi 0, %s27
      %s41 = sphi 0, %s43
      %s44 = sphi 0, %s41
      %s45 = sphi 0, %s44
      %s61 = sphi 0, %s45
      %s67 = sphi 0, %s69
      %s70 = sphi 0, %s67
      %s71 = sphi 0, %s70
      %s87 = sphi 0, %s71
      %s95 = sphi 0, %s97
      %s98 = sphi 0, %s95
      %s99 = sphi 0, %s98
      %s115 = sphi 0, %s99
    $region4: #{tpu_custom_call.1} parent=1 // loop_header_branch
      %20 = sbr.rel (%p18) target = $region8
    $region5: #{tpu_custom_call.1} parent=1 // loop_body
      %s22 = ssub.s32 %s17, 1
      %s23 = ssub.s32 %s17, 2
      %s30 = sadd.s32 1, %s25
      %p31 = scmp.ge.s32.totalorder %s30, 1
      %s32 = scalar_select %p31, 0, %s30
      %s33 = sadd.s32 1, %s24
      %s34 = scalar_select %p31, %s33, %s24
      %p35 = scmp.ge.s32.totalorder %s34, 2
      %s36 = scalar_select %p35, 0, %s34
      %s37 = ssub.s32 %s24, %s36
      %s38 = ssub.s32 %s25, %s32
      %s39 = sor.u32 %s37, %s38
      %p40 = scmp.eq.s32.totalorder %s39, 0
      %s42 = sadd.s32 %s41, 1
      %s43 = scalar_select %p40, %s41, %s42
      %p46 = pneg %p40
      %p47 = scmp.eq.s32.totalorder %s17, 1
      %p48 = por %p46, %p47
      %p49 = scmp.ne.s32.totalorder %s41, %s44
      %p50 = scmp.eq.s32.totalorder %s17, 0
      %p51 = por %p49, %p50
      %p52 = scmp.ne.s32.totalorder %s41, %s44
      %p53 = scmp.eq.s32.totalorder %s22, 1
      %p54 = por %p52, %p53
      %p55 = scmp.ne.s32.totalorder %s44, %s45
      %p56 = scmp.eq.s32.totalorder %s22, 0
      %p57 = por %p55, %p56
      %p58 = scmp.ne.s32.totalorder %s44, %s45
      %p59 = scmp.eq.s32.totalorder %s23, 1
      %p60 = por %p58, %p59
      %p62 = scmp.ne.s32.totalorder %s45, %s61
      %p63 = scmp.eq.s32.totalorder %s23, 0
      %p64 = por %p62, %p63
      %s65 = ssub.s32 %s24, %s36
      %p66 = scmp.eq.s32.totalorder %s65, 0
      %s68 = sadd.s32 %s67, 1
      %s69 = scalar_select %p66, %s67, %s68
      %p72 = pneg %p66
      %p73 = scmp.eq.s32.totalorder %s17, 1
      %p74 = por %p72, %p73
      %p75 = scmp.ne.s32.totalorder %s67, %s70
      %p76 = scmp.eq.s32.totalorder %s17, 0
      %p77 = por %p75, %p76
      %p78 = scmp.ne.s32.totalorder %s67, %s70
      %p79 = scmp.eq.s32.totalorder %s22, 1
      %p80 = por %p78, %p79
      %p81 = scmp.ne.s32.totalorder %s70, %s71
      %p82 = scmp.eq.s32.totalorder %s22, 0
      %p83 = por %p81, %p82
      %p84 = scmp.ne.s32.totalorder %s70, %s71
      %p85 = scmp.eq.s32.totalorder %s23, 1
      %p86 = por %p84, %p85
      %p88 = scmp.ne.s32.totalorder %s71, %s87
      %p89 = scmp.eq.s32.totalorder %s23, 0
      %p90 = por %p88, %p89
      %s91 = ssub.s32 %s24, %s36
      %s92 = ssub.s32 %s25, %s32
      %s93 = sor.u32 %s91, %s92
      %p94 = scmp.eq.s32.totalorder %s93, 0
      %s96 = sadd.s32 %s95, 1
      %s97 = scalar_select %p94, %s95, %s96
      %p100 = pneg %p94
      %p101 = scmp.eq.s32.totalorder %s17, 1
      %p102 = por %p100, %p101
      %p103 = scmp.ne.s32.totalorder %s95, %s98
      %p104 = scmp.eq.s32.totalorder %s17, 0
      %p105 = por %p103, %p104
      %p106 = scmp.ne.s32.totalorder %s95, %s98
      %p107 = scmp.eq.s32.totalorder %s22, 1
      %p108 = por %p106, %p107
      %p109 = scmp.ne.s32.totalorder %s98, %s99
      %p110 = scmp.eq.s32.totalorder %s22, 0
      %p111 = por %p109, %p110
      %p112 = scmp.ne.s32.totalorder %s98, %s99
      %p113 = scmp.eq.s32.totalorder %s23, 1
      %p114 = por %p112, %p113
      %p116 = scmp.ne.s32.totalorder %s99, %s115
      %p117 = scmp.eq.s32.totalorder %s23, 0
      %p118 = por %p116, %p117
      %p119 = scmp.le.s32.totalorder 1, %s17
      %p120 = scmp.lt.s32.totalorder %s17, 3
      %p121 = pnand %p119, %p120
      %p122 = pneg %p121
      // Predicated region
      $region9: #{tpu_custom_call.1} parent=5 // pred_check
        _
      $region10: #{tpu_custom_call.1} parent=5 // pred_check_branch
        %124 = sbr.rel (%p121) target = $region12
      $region11: #{tpu_custom_call.1} parent=5 // pred_region
        %s125 = ssub.s32 %s17, 1
      $region12: #{tpu_custom_call.1} parent=5 // pred_fallthru
        _
      %p126 = scmp.lt.s32.totalorder %s17, 2
      // Predicated region
      $region13: #{tpu_custom_call.1} parent=5 // pred_check
        %p127 = pneg %p126
      $region14: #{tpu_custom_call.1} parent=5 // pred_check_branch
        %129 = sbr.rel (%p127) target = $region16
      $region15: #{tpu_custom_call.1} parent=5 // pred_region
        // Predicated region
        $region17: #{tpu_custom_call.1} parent=15 // pred_check
          %p130 = pneg %p51
        $region18: #{tpu_custom_call.1} parent=15 // pred_check_branch
          %132 = sbr.rel (%p130) target = $region20
        $region19: #{tpu_custom_call.1} parent=15 // pred_region
          %s133 = sand.u32 %s41, 1
          %s134 = scalar_lea.sflag [#allocation3], %s133
          %s135 = sand.u32 %s41, 1
          %s136 = smul.addr %s135, 8
          %s137 = scalar_lea.vmem [#allocation2], %s136
          %s139 = ssub.s32 128, 128
          %140 = vsyncadd %s134, %s139
          %s141 = smul.addr %s25, 2
          %s142 = smul.addr %s24, 2
          %s143 = sadd.s32 %s141, %s142
          %s144 = smul.addr %s143, 64
          %s145 = scalar_lea.hbm %s0, %s144
          %s147 = sshll.u32 %s137, 4
          %s148 = int_to_ptr.vmem [resolvable:$true] %s147
          %150 = dma.hbm_to_vmem [thread:$0]  %s145, 128, %s148, %s134
        $region20: #{tpu_custom_call.1} parent=15 // pred_fallthru
          _
        // Predicated region
        $region21: #{tpu_custom_call.1} parent=15 // pred_check
          %p151 = pneg %p77
        $region22: #{tpu_custom_call.1} parent=15 // pred_check_branch
          %153 = sbr.rel (%p151) target = $region24
        $region23: #{tpu_custom_call.1} parent=15 // pred_region
          %s154 = sand.u32 %s67, 1
          %s155 = scalar_lea.sflag [#allocation6], %s154
          %s156 = sand.u32 %s67, 1
          %s157 = smul.addr %s156, 2
          %s158 = scalar_lea.vmem [#allocation5], %s157
          %s160 = ssub.s32 32, 32
          %161 = vsyncadd %s155, %s160
          %s162 = smul.addr %s24, 2
          %s163 = smul.addr %s162, 16
          %s164 = scalar_lea.hbm %s1, %s163
          %s166 = sshll.u32 %s158, 4
          %s167 = int_to_ptr.vmem [resolvable:$true] %s166
          %169 = dma.hbm_to_vmem [thread:$0]  %s164, 32, %s167, %s155
        $region24: #{tpu_custom_call.1} parent=15 // pred_fallthru
          _
      $region16: #{tpu_custom_call.1} parent=5 // pred_fallthru
        _
      %p170 = scmp.le.s32.totalorder 1, %s17
      %p171 = scmp.lt.s32.totalorder %s17, 3
      %p172 = pnand %p170, %p171
      %p173 = pneg %p172
      // Predicated region
      $region25: #{tpu_custom_call.1} parent=5 // pred_check
        _
      $region26: #{tpu_custom_call.1} parent=5 // pred_check_branch
        %175 = sbr.rel (%p172) target = $region28
      $region27: #{tpu_custom_call.1} parent=5 // pred_region
        %s176 = ssub.s32 %s17, 1
        %s177 = sand.u32 %s44, 1
        %s178 = scalar_lea.sflag [#allocation3], %s177
        %s179 = sand.u32 %s44, 1
        %s180 = smul.addr %s179, 8
        %s181 = scalar_lea.vmem [#allocation2], %s180
        // Predicated region
        $region29: #{tpu_custom_call.1} parent=27 // pred_check
          %p182 = pneg %p57
        $region30: #{tpu_custom_call.1} parent=27 // pred_check_branch
          %184 = sbr.rel (%p182) target = $region32
        $region31: #{tpu_custom_call.1} parent=27 // pred_region
          %185 = dma.done %s178, 128
        $region32: #{tpu_custom_call.1} parent=27 // pred_fallthru
          _
        %s186 = sand.u32 %s70, 1
        %s187 = scalar_lea.sflag [#allocation6], %s186
        %s188 = sand.u32 %s70, 1
        %s189 = smul.addr %s188, 2
        %s190 = scalar_lea.vmem [#allocation5], %s189
        // Predicated region
        $region33: #{tpu_custom_call.1} parent=27 // pred_check
          %p191 = pneg %p83
        $region34: #{tpu_custom_call.1} parent=27 // pred_check_branch
          %193 = sbr.rel (%p191) target = $region36
        $region35: #{tpu_custom_call.1} parent=27 // pred_region
          %194 = dma.done %s187, 32
        $region36: #{tpu_custom_call.1} parent=27 // pred_fallthru
          _
        %s195 = sand.u32 %s44, 1
        %s196 = scalar_lea.sflag [#allocation3], %s195
        %s197 = sand.u32 %s44, 1
        %s198 = smul.addr %s197, 8
        %s199 = scalar_lea.vmem [#allocation2], %s198
        %p200 = pneg %p57
        %p201 = pneg %p54
        %s202 = sand.u32 %s70, 1
        %s203 = scalar_lea.sflag [#allocation6], %s202
        %s204 = sand.u32 %s70, 1
        %s205 = smul.addr %s204, 2
        %s206 = scalar_lea.vmem [#allocation5], %s205
        %p207 = pneg %p83
        %p208 = pneg %p80
        %p209 = pneg %p111
        %p210 = pneg %p108
        %s211 = sand.u32 %s98, 1
        %s212 = scalar_lea.sflag [#allocation4], %s211
        %s213 = sand.u32 %s98, 1
        %s214 = smul.addr %s213, 8
        %s215 = scalar_lea.vmem [#allocation7], %s214
        %v216 = vld [vmem:[%s181] sm:$0xff]
        %v217 = vld [vmem:[%s190] sm:$0x3]
        %v219 = vlaneseq
        %v220 = vshrl.u32 %v219, 7
        %v221 = vsub.s32 0, %v220
        %v222 = vrot.slane %v217, %v221
        %v223 = vlaneseq
        %v224 = vshrl.u32 %v223, 7
        %v225 = vsub.s32 1, %v224
        %v226 = vrot.slane %v217, %v225
        %v227 = vcombine.low %v222, %v226
        %v229 = vadd.f32 %v216, %v227
        %230 = vst [vmem:[%s215] sm:$0xff] %v229
        %s231 = sand.u32 %s98, 1
        %s232 = scalar_lea.sflag [#allocation4], %s231
        %s233 = sand.u32 %s98, 1
        %s234 = smul.addr %s233, 8
        %s235 = scalar_lea.vmem [#allocation7], %s234
        // Predicated region
        $region37: #{tpu_custom_call.1} parent=27 // pred_check
          %p236 = pneg %p108
        $region38: #{tpu_custom_call.1} parent=27 // pred_check_branch
          %238 = sbr.rel (%p236) target = $region40
        $region39: #{tpu_custom_call.1} parent=27 // pred_region
          %s240 = ssub.s32 128, 128
          %241 = vsyncadd %s232, %s240
          %s242 = smul.addr %s27, 2
          %s243 = smul.addr %s26, 2
          %s244 = sadd.s32 %s242, %s243
          %s245 = smul.addr %s244, 64
          %s246 = scalar_lea.hbm %s2, %s245
          %s248 = sshll.u32 %s235, 4
          %s249 = int_to_ptr.vmem [resolvable:$true] %s248
          %251 = dma.vmem_to_hbm [thread:$0]  %s249, 128, %s246, %s232
        $region40: #{tpu_custom_call.1} parent=27 // pred_fallthru
          _
      $region28: #{tpu_custom_call.1} parent=5 // pred_fallthru
        _
      %p252 = scmp.le.s32.totalorder 2, %s17
      // Predicated region
      $region41: #{tpu_custom_call.1} parent=5 // pred_check
        %p253 = pneg %p252
      $region42: #{tpu_custom_call.1} parent=5 // pred_check_branch
        %255 = sbr.rel (%p253) target = $region44
      $region43: #{tpu_custom_call.1} parent=5 // pred_region
        %s256 = ssub.s32 %s17, 2
        // Predicated region
        $region45: #{tpu_custom_call.1} parent=43 // pred_check
          %p257 = pneg %p114
        $region46: #{tpu_custom_call.1} parent=43 // pred_check_branch
          %259 = sbr.rel (%p257) target = $region48
        $region47: #{tpu_custom_call.1} parent=43 // pred_region
          %s260 = sand.u32 %s99, 1
          %s261 = scalar_lea.sflag [#allocation4], %s260
          %s262 = sand.u32 %s99, 1
          %s263 = smul.addr %s262, 8
          %s264 = scalar_lea.vmem [#allocation7], %s263
          %265 = dma.done %s261, 128
        $region48: #{tpu_custom_call.1} parent=43 // pred_fallthru
          _
      $region44: #{tpu_custom_call.1} parent=5 // pred_fallthru
        _
    $region6: #{tpu_custom_call.1} parent=1 // loop_footer
      %s21 = sadd.s32 1, %s17
    $region7: #{tpu_custom_call.1} parent=1 // loop_footer_branch
      %16 = sbr.rel target = $region3
    $region8: #{tpu_custom_call.1} parent=1 // loop_exit
      _
    %266 = vsyncpa [#allocation3], 1
    %s267 = scalar_lea.sflag [#allocation3], 1
    %268 = vsyncpa %s267, 1
    %269 = vsyncpa [#allocation6], 1
    %s270 = scalar_lea.sflag [#allocation6], 1
    %271 = vsyncpa %s270, 1
    %272 = vsyncpa [#allocation4], 1
    %s273 = scalar_lea.sflag [#allocation4], 1
    %274 = vsyncpa %s273, 1

</llo_original>
